<compile_context>
chip_gen: v5e
topology: v5e:2x2
jax: 0.10.0
libtpu: 0.0.40
codegen_flags: <defaults>
</compile_context>

<pallas_src>
import functools

import jax
import jax.numpy as jnp
from jax import lax
from jax.experimental import pallas as pl
from jax.experimental.pallas import tpu as pltpu


def _round_up(x: int, m: int) -> int:
    return ((x + m - 1) // m) * m


# ----------------------------- kernels ------------------------------------ #


def _embed_resident_kernel(labels_ref, table_ref, out_ref, *, precision):
    # labels_ref: (B, 1) int32 block.  table_ref: (C, Dp) full VMEM-resident
    # table (single buffer).  out_ref: (B, Dp) output block.
    b = labels_ref.shape[0]
    c = table_ref.shape[0]

    tbl = table_ref[...]
    if not jnp.issubdtype(tbl.dtype, jnp.floating):
        tbl = tbl.astype(jnp.float32)  # v7x MXU has no integer datapath

    labels = labels_ref[...]                                   # (B, 1)
    class_ids = lax.broadcasted_iota(jnp.int32, (b, c), 1)     # (B, C)
    one_hot = (labels == class_ids).astype(tbl.dtype)          # exact 0/1

    out_ref[...] = jnp.dot(
        one_hot, tbl,
        preferred_element_type=jnp.float32,
        precision=precision,
    ).astype(out_ref.dtype)


def _embed_tiled_kernel(labels_ref, table_ref, out_ref, acc_ref, *, precision):
    # Class-tiled fallback: grid = (row_blocks, class_blocks); accumulate over
    # class chunks (each label matches exactly one chunk).
    k = pl.program_id(1)
    b = labels_ref.shape[0]
    tc = table_ref.shape[0]

    @pl.when(k == 0)
    def _():
        acc_ref[...] = jnp.zeros_like(acc_ref)

    tbl = table_ref[...]
    if not jnp.issubdtype(tbl.dtype, jnp.floating):
        tbl = tbl.astype(jnp.float32)

    labels = labels_ref[...]                                        # (B, 1)
    class_ids = k * tc + lax.broadcasted_iota(jnp.int32, (b, tc), 1)
    one_hot = (labels == class_ids).astype(tbl.dtype)

    acc_ref[...] += jnp.dot(
        one_hot, tbl,
        preferred_element_type=jnp.float32,
        precision=precision,
    )

    @pl.when(k == pl.num_programs(1) - 1)
    def _():
        out_ref[...] = acc_ref[...].astype(out_ref.dtype)


# ----------------------------- wrapper ------------------------------------ #


def class_embedding(labels: jax.Array, table: jax.Array) -> jax.Array:
    """labels: (N,) int; table: (num_classes, D) -> (N, D) of table.dtype."""
    n = int(labels.shape[0])
    num_classes, d = int(table.shape[0]), int(table.shape[1])
    out_dtype = table.dtype
    itemsize = jnp.dtype(out_dtype).itemsize
    precision = (lax.Precision.HIGHEST if out_dtype == jnp.float32
                 else lax.Precision.DEFAULT)

    d_pad = _round_up(d, 128)
    c128 = _round_up(num_classes, 128)
    table_bytes = num_classes * d_pad * itemsize

    # Per-core VMEM capacity (64 MiB on v7x, 128 MiB on v5e/v6e).
    try:
        vmem_cap = int(pltpu.get_tpu_info().vmem_capacity_bytes)
    except Exception:  # conservative fallback (v7x-sized)
        vmem_cap = 64 << 20
    budget = (vmem_cap * 3) // 4

    # Row block: target ~2 MiB output blocks (kernel is writeback-bound), keep
    # at least 2 grid steps when N allows (v7x megacore), never exceed N.
    b = _round_up(max(256, (2 << 20) // max(1, d_pad * itemsize)), 8)
    n8 = _round_up(max(n, 1), 8)
    if n8 >= 16:
        b = min(b, _round_up(-(-n // 2), 8))
    b = max(8, min(b, n8))

    def resident_vmem(rows):
        return (table_bytes                         # table, single buffer
                + 2 * rows * 128 * 4                # (B,1) int32 labels, lane-padded, 2 bufs
                + 2 * rows * d_pad * itemsize       # output blocks, 2 bufs
                + rows * c128 * itemsize            # one-hot intermediate
                + rows * d_pad * 4                  # f32 matmul result
                + (2 << 20))                        # headroom

    use_resident = resident_vmem(8) <= budget

    labels_i32 = labels.astype(jnp.int32)

    if use_resident:
        # Shrink B only if the (corrected) VMEM estimate demands it.
        while resident_vmem(b) > budget and b > 8:
            b = max(8, _round_up(b // 2, 8))
        n_pad = _round_up(n, b)

        labels_p = labels_i32 if n_pad == n else jnp.pad(labels_i32, (0, n_pad - n))
        labels_p = labels_p.reshape(n_pad, 1)
        table_p = table if d_pad == d else jnp.pad(table, ((0, 0), (0, d_pad - d)))

        vmem_needed = resident_vmem(b)
        ck = dict(dimension_semantics=("parallel",))
        if vmem_needed > (16 << 20):  # above the smallest (v5e) scoped default
            ck["vmem_limit_bytes"] = int(min(vmem_needed, vmem_cap))

        cost = pl.CostEstimate(
            flops=2 * n_pad * num_classes * d_pad,
            transcendentals=0,
            bytes_accessed=table_bytes + n_pad * 4 + n_pad * d_pad * itemsize,
        )

        out = pl.pallas_call(
            functools.partial(_embed_resident_kernel, precision=precision),
            out_shape=jax.ShapeDtypeStruct((n_pad, d_pad), out_dtype),
            grid_spec=pltpu.PrefetchScalarGridSpec(
                num_scalar_prefetch=0,
                grid=(n_pad // b,),
                in_specs=[
                    pl.BlockSpec((b, 1), lambda i: (i, 0)),          # labels block
                    # Whole table in VMEM once, single-buffered (untiled spec).
                    pl.BlockSpec(memory_space=pltpu.MemorySpace.VMEM),
                ],
                out_specs=pl.BlockSpec((b, d_pad), lambda i: (i, 0)),
            ),
            compiler_params=pltpu.CompilerParams(**ck),
            cost_estimate=cost,
        )(labels_p, table_p)

    else:
        # Class-tiled fallback: table streamed in (tc, d_pad) chunks, f32
        # accumulator, reduction axis marked "arbitrary".
        tc = 1024

        def tiled_vmem(rows, tcs):
            return (2 * tcs * d_pad * itemsize              # table tiles, 2 bufs
                    + 2 * rows * 128 * 4                    # labels blocks
                    + 2 * rows * d_pad * itemsize           # output blocks
                    + rows * _round_up(tcs, 128) * itemsize  # one-hot intermediate
                    + 2 * rows * d_pad * 4                  # acc scratch + matmul result
                    + (2 << 20))

        while tiled_vmem(b, tc) > budget and tc > 8:
            tc = max(8, tc // 2)
        while tiled_vmem(b, tc) > budget and b > 8:
            b = max(8, _round_up(b // 2, 8))
        tc = min(tc, _round_up(num_classes, 8))

        c_pad = _round_up(num_classes, tc)
        n_pad = _round_up(n, b)

        labels_p = labels_i32 if n_pad == n else jnp.pad(labels_i32, (0, n_pad - n))
        labels_p = labels_p.reshape(n_pad, 1)
        if c_pad == num_classes and d_pad == d:
            table_p = table
        else:
            table_p = jnp.pad(table, ((0, c_pad - num_classes), (0, d_pad - d)))

        vmem_needed = tiled_vmem(b, tc)
        ck = dict(dimension_semantics=("parallel", "arbitrary"))
        if vmem_needed > (16 << 20):
            ck["vmem_limit_bytes"] = int(min(vmem_needed, vmem_cap))

        cost = pl.CostEstimate(
            flops=2 * n_pad * c_pad * d_pad,
            transcendentals=0,
            bytes_accessed=(n_pad // b) * c_pad * d_pad * itemsize
            + n_pad * 4 + n_pad * d_pad * itemsize,
        )

        out = pl.pallas_call(
            functools.partial(_embed_tiled_kernel, precision=precision),
            out_shape=jax.ShapeDtypeStruct((n_pad, d_pad), out_dtype),
            grid_spec=pltpu.PrefetchScalarGridSpec(
                num_scalar_prefetch=0,
                grid=(n_pad // b, c_pad // tc),
                in_specs=[
                    pl.BlockSpec((b, 1), lambda i, k: (i, 0)),
                    pl.BlockSpec((tc, d_pad), lambda i, k: (k, 0)),
                ],
                out_specs=pl.BlockSpec((b, d_pad), lambda i, k: (i, 0)),
                scratch_shapes=[pltpu.VMEM((b, d_pad), jnp.float32)],
            ),
            compiler_params=pltpu.CompilerParams(**ck),
            cost_estimate=cost,
        )(labels_p, table_p)

    if n_pad != n or d_pad != d:
        out = out[:n, :d]
    return out


# ------------------------------- demo -------------------------------------- #

if __name__ == "__main__":
    num_classes = 10
    embedding_dim = 128
    batch = 8

    key = jax.random.PRNGKey(0)
    k_table, k_labels = jax.random.split(key)

    # Deterministic "weights" (nn.Embedding init ~ N(0, 1)).
    table = jax.random.normal(k_table, (num_classes, embedding_dim), dtype=jnp.float32)
    labels = jax.random.randint(k_labels, (batch,), 0, num_classes, dtype=jnp.int32)

    out = class_embedding(labels, table)
    jax.block_until_ready(out)

    # Reference check against plain JAX gather (== PyTorch embedding lookup).
    ref = table[labels]
    assert out.shape == (batch, embedding_dim)
    assert out.dtype == table.dtype
    assert jnp.allclose(out, ref, rtol=1e-6, atol=1e-6), "mismatch vs reference gather"

    print("KERNEL_OK")
</pallas_src>

<mosaic_0001>
module attributes {stable_mosaic.version = 11 : i64} {
  func.func @_embed_resident_kernel(%arg0: i32, %arg1: memref<8x1xi32, #tpu.memory_space<vmem>>, %arg2: memref<10x128xf32, #tpu.memory_space<vmem>>, %arg3: memref<8x128xf32, #tpu.memory_space<vmem>>) attributes {dimension_semantics = [#tpu.dimension_semantics<parallel>], iteration_bounds = array<i64: 1>, scalar_prefetch = 0 : i64, scratch_operands = 0 : i64, tpu.core_type = #tpu.core_type<tc>, window_params = [{transform_indices = @transform_0, window_bounds = array<i64: 8, 1>}, {pipeline_mode = #tpu.pipeline_mode<synchronous>, transform_indices = @transform_1, window_bounds = array<i64: 10, 128>}, {transform_indices = @transform_2, window_bounds = array<i64: 8, 128>}]} {
    %c0 = arith.constant 0 : index
    %c0_0 = arith.constant 0 : index
    %0 = vector.load %arg2[%c0, %c0_0] : memref<10x128xf32, #tpu.memory_space<vmem>>, vector<10x128xf32>
    %c0_1 = arith.constant 0 : index
    %c0_2 = arith.constant 0 : index
    %1 = vector.load %arg1[%c0_1, %c0_2] : memref<8x1xi32, #tpu.memory_space<vmem>>, vector<8x1xi32>
    %2 = tpu.iota {dimensions = array<i32: 1>} : vector<8x10xi32>
    %3 = vector.broadcast %1 : vector<8x1xi32> to vector<8x10xi32>
    %4 = arith.cmpi eq, %3, %2 : vector<8x10xi32>
    %5 = arith.extui %4 : vector<8x10xi1> to vector<8x10xi32>
    %6 = arith.sitofp %5 : vector<8x10xi32> to vector<8x10xf32>
    %cst = arith.constant dense<0.000000e+00> : vector<8x128xf32>
    %7 = tpu.matmul %6, %0, %cst {dimension_numbers = #tpu.dot_dimension_numbers<[1], [0], [0], [1], [0, 0, 1, 1], [], []>, precision = #tpu.contract_precision<fp32>} : vector<8x10xf32>, vector<10x128xf32>, vector<8x128xf32> -> vector<8x128xf32>
    %c0_3 = arith.constant 0 : index
    %c0_4 = arith.constant 0 : index
    %8 = vector.load %arg3[%c0_3, %c0_4] : memref<8x128xf32, #tpu.memory_space<vmem>>, vector<8x128xf32>
    tpu.vector_store %arg3[%c0_3, %c0_4], %7 {strides = array<i32>} : memref<8x128xf32, #tpu.memory_space<vmem>>, vector<8x128xf32>,
    return
  }
  func.func @transform_0(%arg0: i32) -> (i32, i32) {
    %c0_i32 = arith.constant 0 : i32
    %c0_i32_0 = arith.constant 0 : i32
    return %arg0, %c0_i32 : i32, i32
  }
  func.func @transform_1(%arg0: i32) -> (i32, i32) {
    %c0_i32 = arith.constant 0 : i32
    %c0_i32_0 = arith.constant 0 : i32
    %c0_i32_1 = arith.constant 0 : i32
    return %c0_i32, %c0_i32_0 : i32, i32
  }
  func.func @transform_2(%arg0: i32) -> (i32, i32) {
    %c0_i32 = arith.constant 0 : i32
    %c0_i32_0 = arith.constant 0 : i32
    return %arg0, %c0_i32 : i32, i32
  }
}

</mosaic_0001>

<llo_original>
// kernel: tpu_custom_call.1
$region0: #{tpu_custom_call.1}
  #allocation0 [shape = 'u32[]', space=smem, size = 0x4, offset = 0x4, fixed_abs, tag = 'smem constant byte address 0x4 - core index']
  #allocation1 [shape = 'u32[72,128]{1,0:T(1,128)}', space=vmem, size = 0x9000, scoped, tag = 'internal scratch']
  %s0 = inlined_call_operand.vmem [shape: s32[8,1], index: 0, kind: input, shape index: {}]
  %s1 = inlined_call_operand.hbm [shape: f32[10,128], index: 1, kind: input, shape index: {}]
  %s2 = inlined_call_operand.hbm [shape: f32[8,128], index: 2, kind: output, shape index: {}]
  %s3 = sld [smem:[#allocation0]]
  $region22: #{tpu_custom_call.1} parent=0
    _
  %s5 = ssub.s32 1, %s3
  %s6 = scalar_select 0, %s5, %s3
  $region1: #{tpu_custom_call.1} parent=0
    #allocation2 [shape = 'u8[8192]{0}', space=vmem, size = 0x2000, scoped, tag = 'input window, operand 1, single buffered']
    #allocation3 [shape = 's32[1]{0}', space=sflag, size = 0x4, scoped, tag = 'scoped memory for tpu_custom_call.1']
    #allocation4 [shape = 's32[1]{0}', space=sflag, size = 0x4, scoped, tag = 'scoped memory for tpu_custom_call.1']
    #allocation5 [shape = 'u8[4096]{0}', space=vmem, size = 0x1000, scoped, tag = 'output window, operand 0, single buffered']
    %7 = vsyncpa [#allocation3], 0
    %8 = vsyncpa [#allocation4], 0
    // Predicated region
    $region2: #{tpu_custom_call.1} parent=1 // pred_check
      _
    $region3: #{tpu_custom_call.1} parent=1 // pred_check_branch
      %10 = sbr.rel (0) target = $region5
    $region4: #{tpu_custom_call.1} parent=1 // pred_region
      _
    $region5: #{tpu_custom_call.1} parent=1 // pred_fallthru
      _
    // Predicated region
    $region6: #{tpu_custom_call.1} parent=1 // pred_check
      _
    $region7: #{tpu_custom_call.1} parent=1 // pred_check_branch
      %12 = sbr.rel (0) target = $region9
    $region8: #{tpu_custom_call.1} parent=1 // pred_region
      %14 = vsyncadd [#allocation3], 0
      %s15 = sshll.u32 %s1, 4
      %s16 = int_to_ptr.hbm [resolvable:$true] %s15
      %s17 = sshll.u32 [#allocation2], 4
      %s18 = int_to_ptr.vmem [resolvable:$true] %s17
      %23 = dma.hbm_to_vmem [thread:$0]  %s16, 256, %s18, [#allocation3], 128, 128, 8
    $region9: #{tpu_custom_call.1} parent=1 // pred_fallthru
      _
    // Predicated region
    $region10: #{tpu_custom_call.1} parent=1 // pred_check
      _
    $region11: #{tpu_custom_call.1} parent=1 // pred_check_branch
      %25 = sbr.rel (0) target = $region13
    $region12: #{tpu_custom_call.1} parent=1 // pred_region
      %27 = dma.done [#allocation3], 256
    $region13: #{tpu_custom_call.1} parent=1 // pred_fallthru
      _
    %v28 = vld [vmem:[#allocation2] sm:$0xff]
    %v29 = vld [vmem:[#allocation2 + $0x8] sm:$0x3]
    %v30 = vld [vmem:[%s0] sm:$0xff]
    %v31 = vlaneseq
    %v32 = vand.u32 %v31, 127
    %33 = vset.pattern.permute.xlu0 0
    %34 = vperm.xlu0 %33, %v30
    %v35 = vpop.permute.xlu0 %34
    %vm36 = vcmp.eq.s32.totalorder %v35, %v32
    %v37 = vsel %vm36, 1, 0
    %v38 = vcvt.s32.f32 %v37
    %vm39 = vcmask 80896
    %v41 = vsel %vm39, %v38, 0
    %vm43 = vcmask 1041408
    %v45 = vsel %vm43, %v29, 0
    %47 = vmatpush.msra.mxu0 0.0
    %48 = vmatpush.msra.mxu0 0.0
    %49 = vmatpush.msra.mxu0 0.0
    %50 = vmatpush.msra.mxu0 0.0
    %51 = vmatpush.msra.mxu0 0.0
    %52 = vmatpush.msra.mxu0 0.0
    %53 = vmatpush.msra.mxu0 0.0
    %54 = vmatpush.msra.mxu0 0.0
    %55 = vmatpush.msra.mxu0 0.0
    %56 = vmatpush.msra.mxu0 0.0
    %57 = vmatpush.msra.mxu0 0.0
    %58 = vmatpush.msra.mxu0 0.0
    %59 = vmatpush.msra.mxu0 0.0
    %60 = vmatpush.msra.mxu0 0.0
    %v61 = vand.u32 %v45, 4294901760
    %62 = vmatpush.msra.mxu0 %v61
    %v63 = vand.u32 %v28, 4294901760
    %64 = vmatpush.msra.mxu0 %v63
    %v65 = vand.u32 %v41, 4294901760
    %v66 = vsub.f32 %v41, %v65
    %v67 = vand.u32 %v66, 4294901760
    %v68 = vsub.f32 %v66, %v67
    %v69 = vand.u32 %v68, 4294901760
    %70 = vmatmul.f32.gmra.mxu0 %v69
    %v71 = vpop.f32.mrf.mxu0
    %v72 = vadd.f32 0.0, %v71
    %73 = vdwg.mxu0
    %74 = vmatpush.msra.mxu0 0.0
    %75 = vmatpush.msra.mxu0 0.0
    %76 = vmatpush.msra.mxu0 0.0
    %77 = vmatpush.msra.mxu0 0.0
    %78 = vmatpush.msra.mxu0 0.0
    %79 = vmatpush.msra.mxu0 0.0
    %80 = vmatpush.msra.mxu0 0.0
    %81 = vmatpush.msra.mxu0 0.0
    %82 = vmatpush.msra.mxu0 0.0
    %83 = vmatpush.msra.mxu0 0.0
    %84 = vmatpush.msra.mxu0 0.0
    %85 = vmatpush.msra.mxu0 0.0
    %86 = vmatpush.msra.mxu0 0.0
    %87 = vmatpush.msra.mxu0 0.0
    %v88 = vand.u32 %v45, 4294901760
    %v89 = vsub.f32 %v45, %v88
    %v90 = vand.u32 %v89, 4294901760
    %v91 = vsub.f32 %v89, %v90
    %v92 = vand.u32 %v91, 4294901760
    %93 = vmatpush.msra.mxu0 %v92
    %v94 = vand.u32 %v28, 4294901760
    %v95 = vsub.f32 %v28, %v94
    %v96 = vand.u32 %v95, 4294901760
    %v97 = vsub.f32 %v95, %v96
    %v98 = vand.u32 %v97, 4294901760
    %99 = vmatpush.msra.mxu0 %v98
    %v100 = vand.u32 %v41, 4294901760
    %101 = vmatmul.f32.gmra.mxu0 %v100
    %v102 = vpop.f32.mrf.mxu0
    %v103 = vadd.f32 %v72, %v102
    %104 = vdwg.mxu0
    %105 = vmatpush.msra.mxu0 0.0
    %106 = vmatpush.msra.mxu0 0.0
    %107 = vmatpush.msra.mxu0 0.0
    %108 = vmatpush.msra.mxu0 0.0
    %109 = vmatpush.msra.mxu0 0.0
    %110 = vmatpush.msra.mxu0 0.0
    %111 = vmatpush.msra.mxu0 0.0
    %112 = vmatpush.msra.mxu0 0.0
    %113 = vmatpush.msra.mxu0 0.0
    %114 = vmatpush.msra.mxu0 0.0
    %115 = vmatpush.msra.mxu0 0.0
    %116 = vmatpush.msra.mxu0 0.0
    %117 = vmatpush.msra.mxu0 0.0
    %118 = vmatpush.msra.mxu0 0.0
    %v119 = vand.u32 %v45, 4294901760
    %v120 = vsub.f32 %v45, %v119
    %121 = vmatpush.msra.mxu0 %v120
    %v122 = vand.u32 %v28, 4294901760
    %v123 = vsub.f32 %v28, %v122
    %124 = vmatpush.msra.mxu0 %v123
    %v125 = vand.u32 %v41, 4294901760
    %v126 = vsub.f32 %v41, %v125
    %127 = vmatmul.f32.gmra.mxu0 %v126
    %v128 = vpop.f32.mrf.mxu0
    %v129 = vadd.f32 %v103, %v128
    %130 = vdwg.mxu0
    %131 = vmatpush.msra.mxu0 0.0
    %132 = vmatpush.msra.mxu0 0.0
    %133 = vmatpush.msra.mxu0 0.0
    %134 = vmatpush.msra.mxu0 0.0
    %135 = vmatpush.msra.mxu0 0.0
    %136 = vmatpush.msra.mxu0 0.0
    %137 = vmatpush.msra.mxu0 0.0
    %138 = vmatpush.msra.mxu0 0.0
    %139 = vmatpush.msra.mxu0 0.0
    %140 = vmatpush.msra.mxu0 0.0
    %141 = vmatpush.msra.mxu0 0.0
    %142 = vmatpush.msra.mxu0 0.0
    %143 = vmatpush.msra.mxu0 0.0
    %144 = vmatpush.msra.mxu0 0.0
    %v145 = vand.u32 %v45, 4294901760
    %146 = vmatpush.msra.mxu0 %v145
    %v147 = vand.u32 %v28, 4294901760
    %148 = vmatpush.msra.mxu0 %v147
    %v149 = vand.u32 %v41, 4294901760
    %v150 = vsub.f32 %v41, %v149
    %v151 = vand.u32 %v150, 4294901760
    %152 = vmatmul.f32.gmra.mxu0 %v151
    %v153 = vpop.f32.mrf.mxu0
    %v154 = vadd.f32 %v129, %v153
    %155 = vdwg.mxu0
    %156 = vmatpush.msra.mxu0 0.0
    %157 = vmatpush.msra.mxu0 0.0
    %158 = vmatpush.msra.mxu0 0.0
    %159 = vmatpush.msra.mxu0 0.0
    %160 = vmatpush.msra.mxu0 0.0
    %161 = vmatpush.msra.mxu0 0.0
    %162 = vmatpush.msra.mxu0 0.0
    %163 = vmatpush.msra.mxu0 0.0
    %164 = vmatpush.msra.mxu0 0.0
    %165 = vmatpush.msra.mxu0 0.0
    %166 = vmatpush.msra.mxu0 0.0
    %167 = vmatpush.msra.mxu0 0.0
    %168 = vmatpush.msra.mxu0 0.0
    %169 = vmatpush.msra.mxu0 0.0
    %v170 = vand.u32 %v45, 4294901760
    %v171 = vsub.f32 %v45, %v170
    %v172 = vand.u32 %v171, 4294901760
    %173 = vmatpush.msra.mxu0 %v172
    %v174 = vand.u32 %v28, 4294901760
    %v175 = vsub.f32 %v28, %v174
    %v176 = vand.u32 %v175, 4294901760
    %177 = vmatpush.msra.mxu0 %v176
    %v178 = vand.u32 %v41, 4294901760
    %179 = vmatmul.f32.gmra.mxu0 %v178
    %v180 = vpop.f32.mrf.mxu0
    %v181 = vadd.f32 %v154, %v180
    %182 = vdwg.mxu0
    %183 = vmatpush.msra.mxu0 0.0
    %184 = vmatpush.msra.mxu0 0.0
    %185 = vmatpush.msra.mxu0 0.0
    %186 = vmatpush.msra.mxu0 0.0
    %187 = vmatpush.msra.mxu0 0.0
    %188 = vmatpush.msra.mxu0 0.0
    %189 = vmatpush.msra.mxu0 0.0
    %190 = vmatpush.msra.mxu0 0.0
    %191 = vmatpush.msra.mxu0 0.0
    %192 = vmatpush.msra.mxu0 0.0
    %193 = vmatpush.msra.mxu0 0.0
    %194 = vmatpush.msra.mxu0 0.0
    %195 = vmatpush.msra.mxu0 0.0
    %196 = vmatpush.msra.mxu0 0.0
    %v197 = vand.u32 %v45, 4294901760
    %198 = vmatpush.msra.mxu0 %v197
    %v199 = vand.u32 %v28, 4294901760
    %200 = vmatpush.msra.mxu0 %v199
    %v201 = vand.u32 %v41, 4294901760
    %202 = vmatmul.f32.gmra.mxu0 %v201
    %v203 = vpop.f32.mrf.mxu0
    %v204 = vadd.f32 %v181, %v203
    %205 = vdwg.mxu0
    %206 = vst [vmem:[#allocation5] sm:$0xff] %v204
    // Predicated region
    $region14: #{tpu_custom_call.1} parent=1 // pred_check
      _
    $region15: #{tpu_custom_call.1} parent=1 // pred_check_branch
      %208 = sbr.rel (0) target = $region17
    $region16: #{tpu_custom_call.1} parent=1 // pred_region
      %210 = vsyncadd [#allocation4], 0
      %s212 = sshll.u32 [#allocation5], 4
      %s213 = int_to_ptr.vmem [resolvable:$true] %s212
      %s214 = sshll.u32 %s2, 4
      %s215 = int_to_ptr.hbm [resolvable:$true] %s214
      %217 = dma.vmem_to_hbm [thread:$0]  %s213, 128, %s215, [#allocation4]
    $region17: #{tpu_custom_call.1} parent=1 // pred_fallthru
      _
    // Predicated region
    $region18: #{tpu_custom_call.1} parent=1 // pred_check
      _
    $region19: #{tpu_custom_call.1} parent=1 // pred_check_branch
      %219 = sbr.rel (0) target = $region21
    $region20: #{tpu_custom_call.1} parent=1 // pred_region
      %221 = dma.done [#allocation4], 128
    $region21: #{tpu_custom_call.1} parent=1 // pred_fallthru
      _
    %222 = vsyncpa [#allocation3], 1
    %223 = vsyncpa [#allocation4], 1

</llo_original>
